<compile_context>
chip_gen: v7x
topology: tpu7x:2x2x1
jax: 0.10.0
libtpu: 0.0.40
codegen_flags: <defaults>
</compile_context>

<pallas_src>
import functools

import jax
import jax.numpy as jnp
import numpy as np
from jax import lax
from jax.experimental import pallas as pl
from jax.experimental.pallas import tpu as pltpu

LN_EPS = 1e-5     # nn.LayerNorm default eps
GIN_EPS = 0.0     # torch_geometric GINConv default eps


# --------------------------------------------------------------------------------------
# Kernel 1: node embedding sum   x -> sum_i x_embedding[i](x[:, order_i])   (feature-major)
# --------------------------------------------------------------------------------------
def _node_embedding_kernel(xT_ref, tab0_ref, tab1_ref, out_ref):
    """h0^T[:, tile] = tab0^T @ onehot(x[:,0]) + tab1^T @ onehot(x[:,1])  (lane-dense output)."""
    tile_n = out_ref.shape[1]
    ids0 = xT_ref[0:1, :]                                   # [1, TILE_N] int32
    ids1 = xT_ref[1:2, :]
    v0 = tab0_ref.shape[1]
    v1 = tab1_ref.shape[1]
    oh0 = (lax.broadcasted_iota(jnp.int32, (v0, tile_n), 0) == ids0).astype(tab0_ref.dtype)
    oh1 = (lax.broadcasted_iota(jnp.int32, (v1, tile_n), 0) == ids1).astype(tab1_ref.dtype)
    h = jnp.dot(tab0_ref[...], oh0, preferred_element_type=jnp.float32)
    h = h + jnp.dot(tab1_ref[...], oh1, preferred_element_type=jnp.float32)
    out_ref[...] = h.astype(out_ref.dtype)


def node_embedding(xT, tab0T, tab1T, *, tile_n, out_dtype=jnp.bfloat16):
    f, n_pad = xT.shape
    d = tab0T.shape[0]
    return pl.pallas_call(
        _node_embedding_kernel,
        out_shape=jax.ShapeDtypeStruct((d, n_pad), out_dtype),
        grid=(n_pad // tile_n,),
        in_specs=[
            pl.BlockSpec((f, tile_n), lambda i: (0, i)),
            pl.BlockSpec(tab0T.shape, lambda i: (0, 0)),    # resident embedding table
            pl.BlockSpec(tab1T.shape, lambda i: (0, 0)),    # resident embedding table
        ],
        out_specs=pl.BlockSpec((d, tile_n), lambda i: (0, i)),
        compiler_params=pltpu.CompilerParams(
            dimension_semantics=("parallel",),
            vmem_limit_bytes=32 * 1024 * 1024),
    )(xT, tab0T, tab1T)


# --------------------------------------------------------------------------------------
# Kernel 2: one GIN layer  (streamed aggregation + MLP + LayerNorm [+ ReLU])  (feature-major)
# --------------------------------------------------------------------------------------
def _gin_layer_kernel(hT_ref, aT_ref, w1_ref, b1_ref, s1_ref, t1_ref,
                      w2_ref, b2_ref, g_ref, be_ref, out_ref, acc_ref,
                      *, apply_final_relu):
    k = pl.program_id(1)

    @pl.when(k == 0)
    def _init():
        acc_ref[...] = jnp.zeros_like(acc_ref)

    # streamed GIN aggregation:  acc[:, i] += h^T[:, k] @ A_hat^T[k, i]   (bf16 x bf16 -> f32)
    acc_ref[...] += jnp.dot(hT_ref[...], aT_ref[...], preferred_element_type=jnp.float32)

    @pl.when(k == pl.num_programs(1) - 1)
    def _epilogue():
        agg = acc_ref[...]                                  # [D, TILE_N] f32
        # h_theta = MLP([D, D, D]) = Linear -> BatchNorm(eval affine) -> ReLU -> Linear
        z = jnp.dot(w1_ref[...].astype(jnp.bfloat16), agg.astype(jnp.bfloat16),
                    preferred_element_type=jnp.float32) + b1_ref[...]
        z = z * s1_ref[...] + t1_ref[...]
        z = jnp.maximum(z, 0.0)
        z = jnp.dot(w2_ref[...].astype(jnp.bfloat16), z.astype(jnp.bfloat16),
                    preferred_element_type=jnp.float32) + b2_ref[...]
        # batch_norm_type='layer' -> nn.LayerNorm(dim); features live on the sublane axis (0)
        mu = jnp.mean(z, axis=0, keepdims=True)
        var = jnp.mean((z - mu) ** 2, axis=0, keepdims=True)
        z = (z - mu) * lax.rsqrt(var + LN_EPS) * g_ref[...] + be_ref[...]
        if apply_final_relu:                                # ReLU on all but the last GNN layer
            z = jnp.maximum(z, 0.0)
        # drop_ratio = 0.0 -> F.dropout is the identity
        out_ref[...] = z.astype(out_ref.dtype)


def gin_layer(hT, a_hat_T, p, *, apply_final_relu, out_dtype, tile_n):
    d, n_pad = hT.shape
    n_tiles = n_pad // tile_n
    const = lambda shape: pl.BlockSpec(shape, lambda i, k: (0, 0))   # resident params
    kernel = functools.partial(_gin_layer_kernel, apply_final_relu=apply_final_relu)
    return pl.pallas_call(
        kernel,
        out_shape=jax.ShapeDtypeStruct((d, n_pad), out_dtype),
        grid=(n_tiles, n_tiles),        # i = dst node tile (parallel), k = src tile (reduction, last)
        in_specs=[
            pl.BlockSpec((d, tile_n), lambda i, k: (0, k)),          # h^T source tiles (bf16 stream)
            pl.BlockSpec((tile_n, tile_n), lambda i, k: (k, i)),     # A_hat^T tiles (bf16 stream)
            const((d, d)), const((d, 1)), const((d, 1)), const((d, 1)),
            const((d, d)), const((d, 1)), const((d, 1)), const((d, 1)),
        ],
        out_specs=pl.BlockSpec((d, tile_n), lambda i, k: (0, i)),
        scratch_shapes=[pltpu.VMEM((d, tile_n), jnp.float32)],
        compiler_params=pltpu.CompilerParams(
            dimension_semantics=("parallel", "arbitrary"),
            vmem_limit_bytes=32 * 1024 * 1024),
    )(hT, a_hat_T, p['w1'], p['b1'], p['s1'], p['t1'],
      p['w2'], p['b2'], p['g'], p['be'])


# --------------------------------------------------------------------------------------
# Full forward:  GNN.forward(x, edge_index, edge_attr) -> node_representation [N, D]
# --------------------------------------------------------------------------------------
def gnn_forward(x, edge_index, edge_attr, params, *, tile_n=128):
    del edge_attr                       # unused for gnn_type='gin'
    n_real = x.shape[0]
    d = params['emb0T'].shape[0]
    n_pad = pl.cdiv(n_real, tile_n) * tile_n

    # node-feature ids, feature-major + padded (padded ids = 0; padded nodes never reach real
    # outputs because their off-diagonal A_hat^T entries are zero)
    xT = jnp.zeros((2, n_pad), jnp.int32).at[:, :n_real].set(x[:, :2].T.astype(jnp.int32))

    # dense GIN operator:  A_hat^T[j, i] = #edges(j -> i) + (1 + eps) * [i == j]
    src, dst = edge_index[0], edge_index[1]
    a_hat_T = jnp.zeros((n_pad, n_pad), jnp.float32).at[src, dst].add(1.0)
    a_hat_T = (a_hat_T + (1.0 + GIN_EPS) * jnp.eye(n_pad, dtype=jnp.float32)).astype(jnp.bfloat16)

    # x = sum_i x_embedding[i](x[:, order_i])
    hT = node_embedding(xT, params['emb0T'], params['emb1T'], tile_n=tile_n)

    n_layer = len(params['layers'])
    for l, p in enumerate(params['layers']):
        last = (l == n_layer - 1)
        hT = gin_layer(hT, a_hat_T, p,
                       apply_final_relu=not last,
                       out_dtype=jnp.float32 if last else jnp.bfloat16,
                       tile_n=tile_n)

    # layout plumbing only: back to node-major [N, D] and drop padding
    return hT[:, :n_real].T


if __name__ == "__main__":
    key = jax.random.PRNGKey(0)
    D = 32            # emb_dim
    N = 200           # total nodes (padded to 256 -> 2x2 tile grid exercises the pipeline)
    E = 600           # edges
    TILE_N = 128      # raise to 512-2048 for big graphs; on v7x keep bf16 A tiles << 64 MiB VMEM
    V_ATOM, V_CHIR = 119, 4
    N_LAYER = 2

    ks = jax.random.split(key, 10)
    x = jnp.stack([jax.random.randint(ks[0], (N,), 0, V_ATOM),
                   jax.random.randint(ks[1], (N,), 0, V_CHIR)], axis=1).astype(jnp.int32)
    edge_index = jax.random.randint(ks[2], (2, E), 0, N).astype(jnp.int32)
    edge_attr = jax.random.randint(ks[3], (E, 1), 0, 4).astype(jnp.int32)   # unused for 'gin'

    # embedding tables (torch nn.Embedding ~ N(0,1))
    tab0 = jax.random.normal(ks[4], (V_ATOM, D), jnp.float32)
    tab1 = jax.random.normal(ks[5], (V_CHIR, D), jnp.float32)

    def lin_init(k, fan_in, fan_out):
        bound = 1.0 / np.sqrt(fan_in)
        w = jax.random.uniform(k, (fan_out, fan_in), jnp.float32, -bound, bound)
        b = jax.random.uniform(jax.random.fold_in(k, 1), (fan_out,), jnp.float32, -bound, bound)
        return w, b

    layers_raw = []
    for l in range(N_LAYER):
        w1, b1 = lin_init(ks[6 + 2 * l], D, D)
        w2, b2 = lin_init(ks[7 + 2 * l], D, D)
        layers_raw.append(dict(
            w1=w1, b1=b1, w2=w2, b2=b2,
            s1=jnp.ones((D,), jnp.float32), t1=jnp.zeros((D,), jnp.float32),  # MLP BN (eval affine)
            g=jnp.ones((D,), jnp.float32), be=jnp.zeros((D,), jnp.float32)))  # nn.LayerNorm(dim)

    # kernel-layout params: tables transposed/padded to [D, 128] bf16, vectors as [D, 1] columns
    def pad_tab(t, v_pad):
        return jnp.zeros((v_pad, D), t.dtype).at[:t.shape[0]].set(t).T.astype(jnp.bfloat16)

    params = dict(
        emb0T=pad_tab(tab0, 128), emb1T=pad_tab(tab1, 128),
        layers=[dict(w1=p['w1'], b1=p['b1'].reshape(D, 1),
                     s1=p['s1'].reshape(D, 1), t1=p['t1'].reshape(D, 1),
                     w2=p['w2'], b2=p['b2'].reshape(D, 1),
                     g=p['g'].reshape(D, 1), be=p['be'].reshape(D, 1))
                for p in layers_raw])

    out = gnn_forward(x, edge_index, edge_attr, params, tile_n=TILE_N)
    out = jax.block_until_ready(out)

    # pure-JAX reference of the same forward pass (mirrors the kernel's bf16 operand casts)
    def ref():
        t0 = tab0.astype(jnp.bfloat16)
        t1 = tab1.astype(jnp.bfloat16)
        h = (t0[x[:, 0]].astype(jnp.float32) + t1[x[:, 1]].astype(jnp.float32)).astype(jnp.bfloat16)
        A = jnp.zeros((N, N), jnp.float32).at[edge_index[1], edge_index[0]].add(1.0)
        A_hat = (A + (1.0 + GIN_EPS) * jnp.eye(N, dtype=jnp.float32)).astype(jnp.bfloat16)
        for l, p in enumerate(layers_raw):
            agg = jnp.dot(A_hat, h.astype(jnp.bfloat16), preferred_element_type=jnp.float32)
            z = jnp.dot(agg.astype(jnp.bfloat16), p['w1'].T.astype(jnp.bfloat16),
                        preferred_element_type=jnp.float32) + p['b1']
            z = z * p['s1'] + p['t1']
            z = jnp.maximum(z, 0.0)
            z = jnp.dot(z.astype(jnp.bfloat16), p['w2'].T.astype(jnp.bfloat16),
                        preferred_element_type=jnp.float32) + p['b2']
            mu = z.mean(-1, keepdims=True)
            var = ((z - mu) ** 2).mean(-1, keepdims=True)
            z = (z - mu) * lax.rsqrt(var + LN_EPS) * p['g'] + p['be']
            if l < N_LAYER - 1:
                z = jnp.maximum(z, 0.0)
                h = z.astype(jnp.bfloat16)
            else:
                h = z
        return h

    np.testing.assert_allclose(np.asarray(out), np.asarray(ref()), rtol=5e-2, atol=5e-2)
    print("KERNEL_OK")
</pallas_src>

<mosaic_0001>
module attributes {stable_mosaic.version = 11 : i64} {
  func.func @_node_embedding_kernel(%arg0: i32, %arg1: memref<2x128xi32, #tpu.memory_space<vmem>>, %arg2: memref<32x128xbf16, #tpu.memory_space<vmem>>, %arg3: memref<32x128xbf16, #tpu.memory_space<vmem>>, %arg4: memref<32x128xbf16, #tpu.memory_space<vmem>>) attributes {dimension_semantics = [#tpu.dimension_semantics<parallel>], iteration_bounds = array<i64: 2>, scalar_prefetch = 0 : i64, scratch_operands = 0 : i64, tpu.core_type = #tpu.core_type<tc>, window_params = [{transform_indices = @transform_0, window_bounds = array<i64: 2, 128>}, {pipeline_mode = #tpu.pipeline_mode<synchronous>, transform_indices = @transform_1, window_bounds = array<i64: 32, 128>}, {pipeline_mode = #tpu.pipeline_mode<synchronous>, transform_indices = @transform_2, window_bounds = array<i64: 32, 128>}, {transform_indices = @transform_3, window_bounds = array<i64: 32, 128>}]} {
    %c0 = arith.constant 0 : index
    %c0_0 = arith.constant 0 : index
    %0 = vector.load %arg1[%c0, %c0_0] : memref<2x128xi32, #tpu.memory_space<vmem>>, vector<1x128xi32>
    %c1 = arith.constant 1 : index
    %c0_1 = arith.constant 0 : index
    %1 = vector.load %arg1[%c1, %c0_1] : memref<2x128xi32, #tpu.memory_space<vmem>>, vector<1x128xi32>
    %2 = tpu.iota {dimensions = array<i32: 0>} : vector<128x128xi32>
    %3 = vector.broadcast %0 : vector<1x128xi32> to vector<128x128xi32>
    %4 = arith.cmpi eq, %2, %3 : vector<128x128xi32>
    %5 = arith.extui %4 : vector<128x128xi1> to vector<128x128xi32>
    %6 = arith.sitofp %5 : vector<128x128xi32> to vector<128x128xf32>
    %7 = arith.truncf %6 : vector<128x128xf32> to vector<128x128xbf16>
    %8 = tpu.iota {dimensions = array<i32: 0>} : vector<128x128xi32>
    %9 = vector.broadcast %1 : vector<1x128xi32> to vector<128x128xi32>
    %10 = arith.cmpi eq, %8, %9 : vector<128x128xi32>
    %11 = arith.extui %10 : vector<128x128xi1> to vector<128x128xi32>
    %12 = arith.sitofp %11 : vector<128x128xi32> to vector<128x128xf32>
    %13 = arith.truncf %12 : vector<128x128xf32> to vector<128x128xbf16>
    %c0_2 = arith.constant 0 : index
    %c0_3 = arith.constant 0 : index
    %14 = vector.load %arg2[%c0_2, %c0_3] : memref<32x128xbf16, #tpu.memory_space<vmem>>, vector<32x128xbf16>
    %cst = arith.constant dense<0.000000e+00> : vector<32x128xf32>
    %15 = tpu.matmul %14, %7, %cst {dimension_numbers = #tpu.dot_dimension_numbers<[1], [0], [0], [1], [0, 0, 1, 1], [], []>} : vector<32x128xbf16>, vector<128x128xbf16>, vector<32x128xf32> -> vector<32x128xf32>
    %c0_4 = arith.constant 0 : index
    %c0_5 = arith.constant 0 : index
    %16 = vector.load %arg3[%c0_4, %c0_5] : memref<32x128xbf16, #tpu.memory_space<vmem>>, vector<32x128xbf16>
    %cst_6 = arith.constant dense<0.000000e+00> : vector<32x128xf32>
    %17 = tpu.matmul %16, %13, %cst_6 {dimension_numbers = #tpu.dot_dimension_numbers<[1], [0], [0], [1], [0, 0, 1, 1], [], []>} : vector<32x128xbf16>, vector<128x128xbf16>, vector<32x128xf32> -> vector<32x128xf32>
    %18 = arith.addf %15, %17 : vector<32x128xf32>
    %19 = arith.truncf %18 : vector<32x128xf32> to vector<32x128xbf16>
    %c0_7 = arith.constant 0 : index
    %c0_8 = arith.constant 0 : index
    %20 = vector.load %arg4[%c0_7, %c0_8] : memref<32x128xbf16, #tpu.memory_space<vmem>>, vector<32x128xbf16>
    tpu.vector_store %arg4[%c0_7, %c0_8], %19 {strides = array<i32>} : memref<32x128xbf16, #tpu.memory_space<vmem>>, vector<32x128xbf16>,
    return
  }
  func.func @transform_0(%arg0: i32) -> (i32, i32) {
    %c0_i32 = arith.constant 0 : i32
    %c0_i32_0 = arith.constant 0 : i32
    return %c0_i32, %arg0 : i32, i32
  }
  func.func @transform_1(%arg0: i32) -> (i32, i32) {
    %c0_i32 = arith.constant 0 : i32
    %c0_i32_0 = arith.constant 0 : i32
    %c0_i32_1 = arith.constant 0 : i32
    return %c0_i32, %c0_i32_0 : i32, i32
  }
  func.func @transform_2(%arg0: i32) -> (i32, i32) {
    %c0_i32 = arith.constant 0 : i32
    %c0_i32_0 = arith.constant 0 : i32
    %c0_i32_1 = arith.constant 0 : i32
    return %c0_i32, %c0_i32_0 : i32, i32
  }
  func.func @transform_3(%arg0: i32) -> (i32, i32) {
    %c0_i32 = arith.constant 0 : i32
    %c0_i32_0 = arith.constant 0 : i32
    return %c0_i32, %arg0 : i32, i32
  }
}

</mosaic_0001>

<llo_original>
// kernel: tpu_custom_call.1
$region0: #{tpu_custom_call.1}
  #allocation0 [shape = 'u32[]', space=smem, size = 0x4, offset = 0x4, fixed_abs, tag = 'smem constant byte address 0x4 - core index']
  #allocation1 [shape = 'u32[144,128]{1,0:T(1,128)}', space=vmem, size = 0x12000, scoped, tag = 'internal scratch']
  %s0 = inlined_call_operand.hbm [shape: s32[2,256], index: 0, kind: input, shape index: {}]
  %s1 = inlined_call_operand.hbm [shape: bf16[32,128], index: 1, kind: input, shape index: {}]
  %s2 = inlined_call_operand.hbm [shape: bf16[32,128], index: 2, kind: input, shape index: {}]
  %s3 = inlined_call_operand.hbm [shape: bf16[32,256], index: 3, kind: output, shape index: {}]
  %s4 = sld [smem:[#allocation0]]
  $region57: #{tpu_custom_call.1} parent=0
    _
  %s6 = ssub.s32 1, %s4
  %s7 = scalar_select 0, %s6, %s4
  $region1: #{tpu_custom_call.1} parent=0
    #allocation2 [shape = 'u8[2048]{0}', space=vmem, size = 0x800, scoped, tag = 'input window, operand 0']
    #allocation3 [shape = 's32[2]{0}', space=sflag, size = 0x8, scoped, tag = 'scoped memory for tpu_custom_call.1']
    #allocation4 [shape = 's32[2]{0}', space=sflag, size = 0x8, scoped, tag = 'scoped memory for tpu_custom_call.1']
    #allocation5 [shape = 'u8[8192]{0}', space=vmem, size = 0x2000, scoped, tag = 'input window, operand 1, single buffered']
    #allocation6 [shape = 's32[1]{0}', space=sflag, size = 0x4, scoped, tag = 'scoped memory for tpu_custom_call.1']
    #allocation7 [shape = 'u8[8192]{0}', space=vmem, size = 0x2000, scoped, tag = 'input window, operand 2, single buffered']
    #allocation8 [shape = 'u8[16384]{0}', space=vmem, size = 0x4000, scoped, tag = 'output window, operand 0']
    %8 = vsyncpa [#allocation3], 0
    %s9 = scalar_lea.sflag [#allocation3], 1
    %10 = vsyncpa %s9, 0
    %11 = vsyncpa [#allocation6], 0
    %12 = vsyncpa [#allocation4], 0
    %s13 = scalar_lea.sflag [#allocation4], 1
    %14 = vsyncpa %s13, 0
    loop: start=0, step=1, limit=4
    $region2: #{tpu_custom_call.1} parent=1 // loop_pre_header
      _
    $region3: #{tpu_custom_call.1} parent=1 // loop_header
      %s16 = sphi 0, %s20
      %p17 = scmp.ge.s32.totalorder %s16, 4
      %s26 = sphi 0, %s28
      %s29 = sphi 0, %s26
      %s30 = sphi 0, %s29
      %s46 = sphi 0, %s30
      %s50 = sphi 0, %s50
      %s52 = sphi 0, %s50
      %s53 = sphi 0, %s52
      %s67 = sphi 0, %s53
      %s71 = sphi 0, %s71
      %s73 = sphi 0, %s71
      %s74 = sphi 0, %s73
      %s88 = sphi 0, %s74
      %s94 = sphi 0, %s96
      %s97 = sphi 0, %s94
      %s98 = sphi 0, %s97
      %s114 = sphi 0, %s98
    $region4: #{tpu_custom_call.1} parent=1 // loop_header_branch
      %19 = sbr.rel (%p17) target = $region8
    $region5: #{tpu_custom_call.1} parent=1 // loop_body
      %s21 = ssub.s32 %s16, 1
      %s22 = ssub.s32 %s16, 2
      %s23 = sadd.s32 %s16, 1
      %s24 = ssub.s32 %s16, %s23
      %p25 = scmp.eq.s32.totalorder %s24, 0
      %s27 = sadd.s32 %s26, 1
      %s28 = scalar_select %p25, %s26, %s27
      %p31 = pneg %p25
      %p32 = scmp.eq.s32.totalorder %s16, 1
      %p33 = por %p31, %p32
      %p34 = scmp.ne.s32.totalorder %s26, %s29
      %p35 = scmp.eq.s32.totalorder %s16, 0
      %p36 = por %p34, %p35
      %p37 = scmp.ne.s32.totalorder %s26, %s29
      %p38 = scmp.eq.s32.totalorder %s21, 1
      %p39 = por %p37, %p38
      %p40 = scmp.ne.s32.totalorder %s29, %s30
      %p41 = scmp.eq.s32.totalorder %s21, 0
      %p42 = por %p40, %p41
      %p43 = scmp.ne.s32.totalorder %s29, %s30
      %p44 = scmp.eq.s32.totalorder %s22, 1
      %p45 = por %p43, %p44
      %p47 = scmp.ne.s32.totalorder %s30, %s46
      %p48 = scmp.eq.s32.totalorder %s22, 0
      %p49 = por %p47, %p48
      %s51 = sadd.s32 %s50, 1
      %p54 = scmp.eq.s32.totalorder %s16, 1
      %p55 = scmp.ne.s32.totalorder %s50, %s52
      %p56 = scmp.eq.s32.totalorder %s16, 0
      %p57 = por %p55, %p56
      %p58 = scmp.ne.s32.totalorder %s50, %s52
      %p59 = scmp.eq.s32.totalorder %s21, 1
      %p60 = por %p58, %p59
      %p61 = scmp.ne.s32.totalorder %s52, %s53
      %p62 = scmp.eq.s32.totalorder %s21, 0
      %p63 = por %p61, %p62
      %p64 = scmp.ne.s32.totalorder %s52, %s53
      %p65 = scmp.eq.s32.totalorder %s22, 1
      %p66 = por %p64, %p65
      %p68 = scmp.ne.s32.totalorder %s53, %s67
      %p69 = scmp.eq.s32.totalorder %s22, 0
      %p70 = por %p68, %p69
      %s72 = sadd.s32 %s71, 1
      %p75 = scmp.eq.s32.totalorder %s16, 1
      %p76 = scmp.ne.s32.totalorder %s71, %s73
      %p77 = scmp.eq.s32.totalorder %s16, 0
      %p78 = por %p76, %p77
      %p79 = scmp.ne.s32.totalorder %s71, %s73
      %p80 = scmp.eq.s32.totalorder %s21, 1
      %p81 = por %p79, %p80
      %p82 = scmp.ne.s32.totalorder %s73, %s74
      %p83 = scmp.eq.s32.totalorder %s21, 0
      %p84 = por %p82, %p83
      %p85 = scmp.ne.s32.totalorder %s73, %s74
      %p86 = scmp.eq.s32.totalorder %s22, 1
      %p87 = por %p85, %p86
      %p89 = scmp.ne.s32.totalorder %s74, %s88
      %p90 = scmp.eq.s32.totalorder %s22, 0
      %p91 = por %p89, %p90
      %s92 = ssub.s32 %s16, %s23
      %p93 = scmp.eq.s32.totalorder %s92, 0
      %s95 = sadd.s32 %s94, 1
      %s96 = scalar_select %p93, %s94, %s95
      %p99 = pneg %p93
      %p100 = scmp.eq.s32.totalorder %s16, 1
      %p101 = por %p99, %p100
      %p102 = scmp.ne.s32.totalorder %s94, %s97
      %p103 = scmp.eq.s32.totalorder %s16, 0
      %p104 = por %p102, %p103
      %p105 = scmp.ne.s32.totalorder %s94, %s97
      %p106 = scmp.eq.s32.totalorder %s21, 1
      %p107 = por %p105, %p106
      %p108 = scmp.ne.s32.totalorder %s97, %s98
      %p109 = scmp.eq.s32.totalorder %s21, 0
      %p110 = por %p108, %p109
      %p111 = scmp.ne.s32.totalorder %s97, %s98
      %p112 = scmp.eq.s32.totalorder %s22, 1
      %p113 = por %p111, %p112
      %p115 = scmp.ne.s32.totalorder %s98, %s114
      %p116 = scmp.eq.s32.totalorder %s22, 0
      %p117 = por %p115, %p116
      %p118 = scmp.le.s32.totalorder 1, %s16
      %p119 = scmp.lt.s32.totalorder %s16, 3
      %p120 = pnand %p118, %p119
      %p121 = pneg %p120
      // Predicated region
      $region9: #{tpu_custom_call.1} parent=5 // pred_check
        _
      $region10: #{tpu_custom_call.1} parent=5 // pred_check_branch
        %123 = sbr.rel (%p120) target = $region12
      $region11: #{tpu_custom_call.1} parent=5 // pred_region
        %s124 = ssub.s32 %s16, 1
        // Predicated region
        $region13: #{tpu_custom_call.1} parent=11 // pred_check
          %p125 = pneg %p63
        $region14: #{tpu_custom_call.1} parent=11 // pred_check_branch
          %127 = sbr.rel (%p125) target = $region16
        $region15: #{tpu_custom_call.1} parent=11 // pred_region
          %s129 = ssub.s32 256, 256
          %130 = vsyncadd [#allocation6], %s129
          %s131 = sshll.u32 [#allocation5], 4
          %s132 = int_to_ptr.vmem [resolvable:$true] %s131
          %137 = dma.hbm_to_vmem [thread:$0]  %s1, 256, %s132, [#allocation6], 64, 64, 4
        $region16: #{tpu_custom_call.1} parent=11 // pred_fallthru
          _
        // Predicated region
        $region17: #{tpu_custom_call.1} parent=11 // pred_check
          %p138 = pneg %p84
        $region18: #{tpu_custom_call.1} parent=11 // pred_check_branch
          %140 = sbr.rel (%p138) target = $region20
        $region19: #{tpu_custom_call.1} parent=11 // pred_region
          %s142 = ssub.s32 256, 256
          %143 = vsyncadd [#allocation6], %s142
          %s144 = sshll.u32 [#allocation7], 4
          %s145 = int_to_ptr.vmem [resolvable:$true] %s144
          %150 = dma.hbm_to_vmem [thread:$0]  %s2, 256, %s145, [#allocation6], 64, 64, 4
        $region20: #{tpu_custom_call.1} parent=11 // pred_fallthru
          _
      $region12: #{tpu_custom_call.1} parent=5 // pred_fallthru
        _
      %p151 = scmp.lt.s32.totalorder %s16, 2
      // Predicated region
      $region21: #{tpu_custom_call.1} parent=5 // pred_check
        %p152 = pneg %p151
      $region22: #{tpu_custom_call.1} parent=5 // pred_check_branch
        %154 = sbr.rel (%p152) target = $region24
      $region23: #{tpu_custom_call.1} parent=5 // pred_region
        // Predicated region
        $region25: #{tpu_custom_call.1} parent=23 // pred_check
          %p155 = pneg %p36
        $region26: #{tpu_custom_call.1} parent=23 // pred_check_branch
          %157 = sbr.rel (%p155) target = $region28
        $region27: #{tpu_custom_call.1} parent=23 // pred_region
          %s158 = sand.u32 %s26, 1
          %s159 = scalar_lea.sflag [#allocation3], %s158
          %s160 = sand.u32 %s26, 1
          %s161 = smul.addr %s160, 2
          %s162 = scalar_lea.vmem [#allocation2], %s161
          %s164 = ssub.s32 32, 32
          %165 = vsyncadd %s159, %s164
          %s166 = smul.addr %s16, 32
          %s167 = scalar_lea.hbm %s0, %s166
          %s169 = sshll.u32 %s162, 4
          %s170 = int_to_ptr.vmem [resolvable:$true] %s169
          %172 = dma.hbm_to_vmem [thread:$0]  %s167, 32, %s170, %s159
        $region28: #{tpu_custom_call.1} parent=23 // pred_fallthru
          _
      $region24: #{tpu_custom_call.1} parent=5 // pred_fallthru
        _
      %p173 = scmp.le.s32.totalorder 1, %s16
      %p174 = scmp.lt.s32.totalorder %s16, 3
      %p175 = pnand %p173, %p174
      %p176 = pneg %p175
      // Predicated region
      $region29: #{tpu_custom_call.1} parent=5 // pred_check
        _
      $region30: #{tpu_custom_call.1} parent=5 // pred_check_branch
        %178 = sbr.rel (%p175) target = $region32
      $region31: #{tpu_custom_call.1} parent=5 // pred_region
        %s179 = ssub.s32 %s16, 1
        %s180 = sand.u32 %s29, 1
        %s181 = scalar_lea.sflag [#allocation3], %s180
        %s182 = sand.u32 %s29, 1
        %s183 = smul.addr %s182, 2
        %s184 = scalar_lea.vmem [#allocation2], %s183
        // Predicated region
        $region33: #{tpu_custom_call.1} parent=31 // pred_check
          %p185 = pneg %p42
        $region34: #{tpu_custom_call.1} parent=31 // pred_check_branch
          %187 = sbr.rel (%p185) target = $region36
        $region35: #{tpu_custom_call.1} parent=31 // pred_region
          %188 = dma.done %s181, 32
        $region36: #{tpu_custom_call.1} parent=31 // pred_fallthru
          _
        // Predicated region
        $region37: #{tpu_custom_call.1} parent=31 // pred_check
          %p189 = pneg %p63
        $region38: #{tpu_custom_call.1} parent=31 // pred_check_branch
          %191 = sbr.rel (%p189) target = $region40
        $region39: #{tpu_custom_call.1} parent=31 // pred_region
          %192 = dma.done [#allocation6], 256
        $region40: #{tpu_custom_call.1} parent=31 // pred_fallthru
          _
        // Predicated region
        $region41: #{tpu_custom_call.1} parent=31 // pred_check
          %p193 = pneg %p84
        $region42: #{tpu_custom_call.1} parent=31 // pred_check_branch
          %195 = sbr.rel (%p193) target = $region44
        $region43: #{tpu_custom_call.1} parent=31 // pred_region
          %196 = dma.done [#allocation6], 256
        $region44: #{tpu_custom_call.1} parent=31 // pred_fallthru
          _
        %s197 = sand.u32 %s29, 1
        %s198 = scalar_lea.sflag [#allocation3], %s197
        %s199 = sand.u32 %s29, 1
        %s200 = smul.addr %s199, 2
        %s201 = scalar_lea.vmem [#allocation2], %s200
        %p202 = pneg %p42
        %p203 = pneg %p39
        %p204 = pneg %p63
        %p205 = pneg %p60
        %p206 = pneg %p84
        %p207 = pneg %p81
        %p208 = pneg %p110
        %p209 = pneg %p107
        %s210 = sand.u32 %s97, 1
        %s211 = scalar_lea.sflag [#allocation4], %s210
        %s212 = sand.u32 %s97, 1
        %s213 = smul.addr %s212, 16
        %s214 = scalar_lea.vmem [#allocation8], %s213
        %v216 = vld [vmem:[%s184] sm:$0x1]
        %v217 = vld [vmem:[%s184 + $0x1] sm:$0x1]
        %v218 = vlaneseq
        %v219 = vshrl.u32 %v218, 7
        %v220 = vadd.s32 %v219, 8
        %v221 = vadd.s32 %v219, 16
        %v222 = vadd.s32 %v219, 24
        %v223 = vadd.s32 %v219, 32
        %v224 = vadd.s32 %v219, 40
        %v225 = vadd.s32 %v219, 48
        %v226 = vadd.s32 %v219, 56
        %v227 = vadd.s32 %v219, 64
        %v228 = vadd.s32 %v219, 72
        %v229 = vadd.s32 %v219, 80
        %v230 = vadd.s32 %v219, 88
        %v231 = vadd.s32 %v219, 96
        %v232 = vadd.s32 %v219, 104
        %v233 = vadd.s32 %v219, 112
        %v234 = vadd.s32 %v219, 120
        %v235 = vlaneseq
        %v236 = vshrl.u32 %v235, 7
        %v237 = vsub.s32 0, %v236
        %v238 = vrot.slane %v216, %v237
        %vm239 = vcmp.eq.s32.totalorder %v219, %v238
        %vm240 = vcmp.eq.s32.totalorder %v220, %v238
        %vm241 = vcmp.eq.s32.totalorder %v221, %v238
        %vm242 = vcmp.eq.s32.totalorder %v222, %v238
        %vm243 = vcmp.eq.s32.totalorder %v223, %v238
        %vm244 = vcmp.eq.s32.totalorder %v224, %v238
        %vm245 = vcmp.eq.s32.totalorder %v225, %v238
        %vm246 = vcmp.eq.s32.totalorder %v226, %v238
        %vm247 = vcmp.eq.s32.totalorder %v227, %v238
        %vm248 = vcmp.eq.s32.totalorder %v228, %v238
        %vm249 = vcmp.eq.s32.totalorder %v229, %v238
        %vm250 = vcmp.eq.s32.totalorder %v230, %v238
        %vm251 = vcmp.eq.s32.totalorder %v231, %v238
        %vm252 = vcmp.eq.s32.totalorder %v232, %v238
        %vm253 = vcmp.eq.s32.totalorder %v233, %v238
        %vm254 = vcmp.eq.s32.totalorder %v234, %v238
        %v255 = vsel %vm239, 1, 0
        %v256 = vsel %vm240, 1, 0
        %v257 = vsel %vm241, 1, 0
        %v258 = vsel %vm242, 1, 0
        %v259 = vsel %vm243, 1, 0
        %v260 = vsel %vm244, 1, 0
        %v261 = vsel %vm245, 1, 0
        %v262 = vsel %vm246, 1, 0
        %v263 = vsel %vm247, 1, 0
        %v264 = vsel %vm248, 1, 0
        %v265 = vsel %vm249, 1, 0
        %v266 = vsel %vm250, 1, 0
        %v267 = vsel %vm251, 1, 0
        %v268 = vsel %vm252, 1, 0
        %v269 = vsel %vm253, 1, 0
        %v270 = vsel %vm254, 1, 0
        %v271 = vcvt.s32.f32 %v255
        %v272 = vcvt.s32.f32 %v256
        %v273 = vcvt.s32.f32 %v257
        %v274 = vcvt.s32.f32 %v258
        %v275 = vcvt.s32.f32 %v259
        %v276 = vcvt.s32.f32 %v260
        %v277 = vcvt.s32.f32 %v261
        %v278 = vcvt.s32.f32 %v262
        %v279 = vcvt.s32.f32 %v263
        %v280 = vcvt.s32.f32 %v264
        %v281 = vcvt.s32.f32 %v265
        %v282 = vcvt.s32.f32 %v266
        %v283 = vcvt.s32.f32 %v267
        %v284 = vcvt.s32.f32 %v268
        %v285 = vcvt.s32.f32 %v269
        %v286 = vcvt.s32.f32 %v270
        %v287 = vpack.c.bf16 %v272, %v271
        %v288 = vpack.c.bf16 %v274, %v273
        %v289 = vpack.c.bf16 %v276, %v275
        %v290 = vpack.c.bf16 %v278, %v277
        %v291 = vpack.c.bf16 %v280, %v279
        %v292 = vpack.c.bf16 %v282, %v281
        %v293 = vpack.c.bf16 %v284, %v283
        %v294 = vpack.c.bf16 %v286, %v285
        %v295 = vlaneseq
        %v296 = vshrl.u32 %v295, 7
        %v297 = vsub.s32 0, %v296
        %v298 = vrot.slane %v217, %v297
        %vm299 = vcmp.eq.s32.totalorder %v219, %v298
        %vm300 = vcmp.eq.s32.totalorder %v220, %v298
        %vm301 = vcmp.eq.s32.totalorder %v221, %v298
        %vm302 = vcmp.eq.s32.totalorder %v222, %v298
        %vm303 = vcmp.eq.s32.totalorder %v223, %v298
        %vm304 = vcmp.eq.s32.totalorder %v224, %v298
        %vm305 = vcmp.eq.s32.totalorder %v225, %v298
        %vm306 = vcmp.eq.s32.totalorder %v226, %v298
        %vm307 = vcmp.eq.s32.totalorder %v227, %v298
        %vm308 = vcmp.eq.s32.totalorder %v228, %v298
        %vm309 = vcmp.eq.s32.totalorder %v229, %v298
        %vm310 = vcmp.eq.s32.totalorder %v230, %v298
        %vm311 = vcmp.eq.s32.totalorder %v231, %v298
        %vm312 = vcmp.eq.s32.totalorder %v232, %v298
        %vm313 = vcmp.eq.s32.totalorder %v233, %v298
        %vm314 = vcmp.eq.s32.totalorder %v234, %v298
        %v315 = vsel %vm299, 1, 0
        %v316 = vsel %vm300, 1, 0
        %v317 = vsel %vm301, 1, 0
        %v318 = vsel %vm302, 1, 0
        %v319 = vsel %vm303, 1, 0
        %v320 = vsel %vm304, 1, 0
        %v321 = vsel %vm305, 1, 0
        %v322 = vsel %vm306, 1, 0
        %v323 = vsel %vm307, 1, 0
        %v324 = vsel %vm308, 1, 0
        %v325 = vsel %vm309, 1, 0
        %v326 = vsel %vm310, 1, 0
        %v327 = vsel %vm311, 1, 0
        %v328 = vsel %vm312, 1, 0
        %v329 = vsel %vm313, 1, 0
        %v330 = vsel %vm314, 1, 0
        %v331 = vcvt.s32.f32 %v315
        %v332 = vcvt.s32.f32 %v316
        %v333 = vcvt.s32.f32 %v317
        %v334 = vcvt.s32.f32 %v318
        %v335 = vcvt.s32.f32 %v319
        %v336 = vcvt.s32.f32 %v320
        %v337 = vcvt.s32.f32 %v321
        %v338 = vcvt.s32.f32 %v322
        %v339 = vcvt.s32.f32 %v323
        %v340 = vcvt.s32.f32 %v324
        %v341 = vcvt.s32.f32 %v325
        %v342 = vcvt.s32.f32 %v326
        %v343 = vcvt.s32.f32 %v327
        %v344 = vcvt.s32.f32 %v328
        %v345 = vcvt.s32.f32 %v329
        %v346 = vcvt.s32.f32 %v330
        %v347 = vpack.c.bf16 %v332, %v331
        %v348 = vpack.c.bf16 %v334, %v333
        %v349 = vpack.c.bf16 %v336, %v335
        %v350 = vpack.c.bf16 %v338, %v337
        %v351 = vpack.c.bf16 %v340, %v339
        %v352 = vpack.c.bf16 %v342, %v341
        %v353 = vpack.c.bf16 %v344, %v343
        %v354 = vpack.c.bf16 %v346, %v345
        %v355 = vld [vmem:[#allocation5] sm:$0xf]
        %v356 = vld [vmem:[#allocation5 + $0x4] sm:$0xf]
        %v357 = vld [vmem:[#allocation5 + $0x8] sm:$0xf]
        %v358 = vld [vmem:[#allocation5 + $0xc] sm:$0xf]
        %v359 = vld [vmem:[#allocation7] sm:$0xf]
        %v360 = vld [vmem:[#allocation7 + $0x4] sm:$0xf]
        %v361 = vld [vmem:[#allocation7 + $0x8] sm:$0xf]
        %v362 = vld [vmem:[#allocation7 + $0xc] sm:$0xf]
        %v367 = vunpack.c.l.b16 %v359
        %v368 = vunpack.c.l.b16 %v360
        %v369 = vunpack.c.l.b16 %v361
        %v370 = vunpack.c.l.b16 %v362
        %v371 = vpack.c.b16 %v368, %v367
        %v372 = vpack.c.b16 %v370, %v369
        %375 = vmatprep.subr.bf16.mxu0 0
        %376 = vmatpush1.bf16.msra.mxu0 %v347
        %377 = vmatprep.subr.bf16.mxu0 0
        %378 = vmatpush1.bf16.msra.mxu0 %v348
        %379 = vmatprep.subr.bf16.mxu0 0
        %380 = vmatpush1.bf16.msra.mxu0 %v349
        %381 = vmatprep.subr.bf16.mxu0 0
        %382 = vmatpush1.bf16.msra.mxu0 %v350
        %383 = vmatprep.subr.bf16.mxu0 0
        %384 = vmatpush1.bf16.msra.mxu0 %v351
        %385 = vmatprep.subr.bf16.mxu0 0
        %386 = vmatpush1.bf16.msra.mxu0 %v352
        %387 = vmatprep.subr.bf16.mxu0 0
        %388 = vmatpush1.bf16.msra.mxu0 %v353
        %389 = vmatprep.subr.bf16.mxu0 0
        %390 = vmatpush1.bf16.msra.mxu0 %v354
        %391 = vmatprep.subr.bf16.mxu0 0
        %392 = vmatpush1.bf16.msra.mxu0 0
        %393 = vmatprep.subr.bf16.mxu0 0
        %394 = vmatpush1.bf16.msra.mxu0 0
        %395 = vmatprep.subr.bf16.mxu0 0
        %396 = vmatpush1.bf16.msra.mxu0 0
        %397 = vmatprep.subr.bf16.mxu0 0
        %398 = vmatpush1.bf16.msra.mxu0 0
        %399 = vmatprep.subr.bf16.mxu0 0
        %400 = vmatpush1.bf16.msra.mxu0 0
        %401 = vmatprep.subr.bf16.mxu0 0
        %402 = vmatpush1.bf16.msra.mxu0 0
        %403 = vmatprep.subr.bf16.mxu0 0
        %404 = vmatpush1.bf16.msra.mxu0 0
        %405 = vmatprep.subr.bf16.mxu0 0
        %406 = vmatpush1.bf16.msra.mxu0 0
        %407 = vmatprep.mubr.bf16.mxu0 0
        %408 = vmatmul.mubr.bf16.gmra.mrb[0].mxu0 %v371
        %v409 = vpop.f32.mrb[0].mxu0
        %v410 = vadd.f32 0.0, %v409
        %v411 = vpop.f32.mrb[0].mxu0
        %v412 = vpop.f32.mrb[0].mxu0
        %v413 = vadd.f32 0.0, %v412
        %v414 = vpop.f32.mrb[0].mxu0
        %415 = vmatprep.mubr.bf16.mxu0 0
        %416 = vmatmul.mubr.bf16.gmra.mrb[0].mxu0 %v372
        %v417 = vpop.f32.mrb[0].mxu0
        %v418 = vadd.f32 0.0, %v417
        %v419 = vpop.f32.mrb[0].mxu0
        %v420 = vpop.f32.mrb[0].mxu0
        %v421 = vadd.f32 0.0, %v420
        %v422 = vpop.f32.mrb[0].mxu0
        %423 = vdwg.mxu0
        %v428 = vunpack.c.l.b16 %v355
        %v429 = vunpack.c.l.b16 %v356
        %v430 = vunpack.c.l.b16 %v357
        %v431 = vunpack.c.l.b16 %v358
        %v432 = vpack.c.b16 %v429, %v428
        %v433 = vpack.c.b16 %v431, %v430
        %436 = vmatprep.subr.bf16.mxu0 0
        %437 = vmatpush1.bf16.msra.mxu0 %v287
        %438 = vmatprep.subr.bf16.mxu0 0
        %439 = vmatpush1.bf16.msra.mxu0 %v288
        %440 = vmatprep.subr.bf16.mxu0 0
        %441 = vmatpush1.bf16.msra.mxu0 %v289
        %442 = vmatprep.subr.bf16.mxu0 0
        %443 = vmatpush1.bf16.msra.mxu0 %v290
        %444 = vmatprep.subr.bf16.mxu0 0
        %445 = vmatpush1.bf16.msra.mxu0 %v291
        %446 = vmatprep.subr.bf16.mxu0 0
        %447 = vmatpush1.bf16.msra.mxu0 %v292
        %448 = vmatprep.subr.bf16.mxu0 0
        %449 = vmatpush1.bf16.msra.mxu0 %v293
        %450 = vmatprep.subr.bf16.mxu0 0
        %451 = vmatpush1.bf16.msra.mxu0 %v294
        %452 = vmatprep.subr.bf16.mxu0 0
        %453 = vmatpush1.bf16.msra.mxu0 0
        %454 = vmatprep.subr.bf16.mxu0 0
        %455 = vmatpush1.bf16.msra.mxu0 0
        %456 = vmatprep.subr.bf16.mxu0 0
        %457 = vmatpush1.bf16.msra.mxu0 0
        %458 = vmatprep.subr.bf16.mxu0 0
        %459 = vmatpush1.bf16.msra.mxu0 0
        %460 = vmatprep.subr.bf16.mxu0 0
        %461 = vmatpush1.bf16.msra.mxu0 0
        %462 = vmatprep.subr.bf16.mxu0 0
        %463 = vmatpush1.bf16.msra.mxu0 0
        %464 = vmatprep.subr.bf16.mxu0 0
        %465 = vmatpush1.bf16.msra.mxu0 0
        %466 = vmatprep.subr.bf16.mxu0 0
        %467 = vmatpush1.bf16.msra.mxu0 0
        %468 = vmatprep.mubr.bf16.mxu0 0
        %469 = vmatmul.mubr.bf16.gmra.mrb[0].mxu0 %v432
        %v470 = vpop.f32.mrb[0].mxu0
        %v471 = vadd.f32 %v410, %v470
        %v472 = vpop.f32.mrb[0].mxu0
        %v473 = vpop.f32.mrb[0].mxu0
        %v474 = vadd.f32 %v413, %v473
        %v475 = vpop.f32.mrb[0].mxu0
        %476 = vmatprep.mubr.bf16.mxu0 0
        %477 = vmatmul.mubr.bf16.gmra.mrb[0].mxu0 %v433
        %v478 = vpop.f32.mrb[0].mxu0
        %v479 = vadd.f32 %v418, %v478
        %v480 = vpop.f32.mrb[0].mxu0
        %v481 = vpop.f32.mrb[0].mxu0
        %v482 = vadd.f32 %v421, %v481
        %v483 = vpop.f32.mrb[0].mxu0
        %484 = vdwg.mxu0
        %v485 = vpack.c.bf16 %v474, %v471
        %v486 = vpack.c.bf16 %v482, %v479
        %v489 = vunpack.c.l.b16 %v485
        %v490 = vunpack.c.h.b16 %v485
        %v491 = vunpack.c.l.b16 %v486
        %v492 = vunpack.c.h.b16 %v486
        %v493 = vpack.c.b16 %v489, %v489
        %v494 = vpack.c.b16 %v490, %v490
        %v495 = vpack.c.b16 %v491, %v491
        %v496 = vpack.c.b16 %v492, %v492
        %501 = vst [vmem:[%s214] sm:$0xf] %v493
        %502 = vst [vmem:[%s214 + $0x4] sm:$0xf] %v494
        %503 = vst [vmem:[%s214 + $0x8] sm:$0xf] %v495
        %504 = vst [vmem:[%s214 + $0xc] sm:$0xf] %v496
        %s505 = sand.u32 %s97, 1
        %s506 = scalar_lea.sflag [#allocation4], %s505
        %s507 = sand.u32 %s97, 1
        %s508 = smul.addr %s507, 16
        %s509 = scalar_lea.vmem [#allocation8], %s508
        // Predicated region
        $region45: #{tpu_custom_call.1} parent=31 // pred_check
          %p510 = pneg %p107
        $region46: #{tpu_custom_call.1} parent=31 // pred_check_branch
          %512 = sbr.rel (%p510) target = $region48
        $region47: #{tpu_custom_call.1} parent=31 // pred_region
          %s514 = ssub.s32 256, 256
          %515 = vsyncadd %s506, %s514
          %s516 = smul.addr %s21, 64
          %s517 = scalar_lea.hbm %s3, %s516
          %s518 = sshll.u32 %s509, 4
          %s519 = int_to_ptr.vmem [resolvable:$true] %s518
          %524 = dma.vmem_to_hbm [thread:$0]  %s519, 256, %s517, %s506, 64, 128, 4
        $region48: #{tpu_custom_call.1} parent=31 // pred_fallthru
          _
      $region32: #{tpu_custom_call.1} parent=5 // pred_fallthru
        _
      %p525 = scmp.le.s32.totalorder 2, %s16
      // Predicated region
      $region49: #{tpu_custom_call.1} parent=5 // pred_check
        %p526 = pneg %p525
      $region50: #{tpu_custom_call.1} parent=5 // pred_check_branch
        %528 = sbr.rel (%p526) target = $region52
      $region51: #{tpu_custom_call.1} parent=5 // pred_region
        %s529 = ssub.s32 %s16, 2
        // Predicated region
        $region53: #{tpu_custom_call.1} parent=51 // pred_check
          %p530 = pneg %p113
        $region54: #{tpu_custom_call.1} parent=51 // pred_check_branch
          %532 = sbr.rel (%p530) target = $region56
        $region55: #{tpu_custom_call.1} parent=51 // pred_region
          %s533 = sand.u32 %s98, 1
          %s534 = scalar_lea.sflag [#allocation4], %s533
          %s535 = sand.u32 %s98, 1
          %s536 = smul.addr %s535, 16
          %s537 = scalar_lea.vmem [#allocation8], %s536
          %538 = dma.done %s534, 256
        $region56: #{tpu_custom_call.1} parent=51 // pred_fallthru
          _
      $region52: #{tpu_custom_call.1} parent=5 // pred_fallthru
        _
    $region6: #{tpu_custom_call.1} parent=1 // loop_footer
      %s20 = sadd.s32 1, %s16
    $region7: #{tpu_custom_call.1} parent=1 // loop_footer_branch
      %15 = sbr.rel target = $region3
    $region8: #{tpu_custom_call.1} parent=1 // loop_exit
      _
    %539 = vsyncpa [#allocation3], 1
    %s540 = scalar_lea.sflag [#allocation3], 1
    %541 = vsyncpa %s540, 1
    %542 = vsyncpa [#allocation6], 1
    %543 = vsyncpa [#allocation4], 1
    %s544 = scalar_lea.sflag [#allocation4], 1
    %545 = vsyncpa %s544, 1

</llo_original>
